<compile_context>
chip_gen: v7x
topology: tpu7x:2x2x1
jax: 0.10.0
libtpu: 0.0.40
codegen_flags: <defaults>
</compile_context>

<pallas_src>
import math

import jax
import jax.numpy as jnp
import numpy as np
from jax import lax
from jax.experimental import pallas as pl
from jax.experimental.pallas import tpu as pltpu

# ---------------------------------------------------------------------------
# problem sizes (in_c == out_c so the residual add is well-defined)
# ---------------------------------------------------------------------------
N, C, H, W = 2, 4, 16, 16          # batch, channels, height, width
MED = 2 * C                         # med_channels = int(2 * in_c)
R = N * C                           # rows of the flattened view (8)
P = H * W                           # lanes of the flattened view (256)
EPS = 1e-5                          # nn.LayerNorm default eps
INV_SQRT2 = 1.0 / math.sqrt(2.0)
TAPS = [(dy, dx) for dy in (-1, 0, 1) for dx in (-1, 0, 1)]   # k = (dy+1)*3 + (dx+1)


def _build_tap_mask():
    """Static (9, P) 0/1 masks: destination (h,w) valid for tap (dy,dx) ('same' pad)."""
    hh = np.arange(P) // W
    ww = np.arange(P) % W
    m = np.zeros((9, P), np.float32)
    for k, (dy, dx) in enumerate(TAPS):
        m[k] = ((hh + dy >= 0) & (hh + dy < H) &
                (ww + dx >= 0) & (ww + dx < W)).astype(np.float32)
    return m


TAP_MASK = _build_tap_mask()        # static, folded with dwconv weights in the wrapper


def _gelu(v):
    # exact (erf-based) GELU, matching torch.nn.GELU() default
    return 0.5 * v * (1.0 + lax.erf(v * INV_SQRT2))


# ---------------------------------------------------------------------------
# Pallas kernel: whole problem in one invocation, activations in VMEM,
# parameters as small VMEM column/coefficient arrays (no SMEM scalars).
# ---------------------------------------------------------------------------
def bottleneck_kernel(x_ref, dwcoef_ref, dwb_ref, w1_ref, b1_ref,
                      w2_ref, b2_ref, gamma_ref, beta_ref, o_ref):
    # x_ref / o_ref : (R, P) = (N*C, H*W) float32 in VMEM
    # dwcoef_ref    : (9, R, P)  per-tap coefficient = dwconv weight (per row) * boundary mask
    # dwb_ref       : (R, 1)     depthwise bias column (tiled over batch)
    # w1_ref        : (C, MED, 1)  pwconv1 weight columns  (w1_ref[c] -> (MED,1))
    # b1_ref        : (MED, 1)
    # w2_ref        : (MED, C, 1)  pwconv2 weight columns  (w2_ref[m] -> (C,1))
    # b2_ref        : (C, 1)
    # gamma_ref / beta_ref : (C, 1)  LayerNorm affine columns
    xf = x_ref[...]                                          # (R, P)

    # ---- depthwise 3x3 conv, full (R,P) width, fused roll -> masked FMA ----
    acc = dwb_ref[...]                                       # (R,1) bias, broadcasts on 1st add
    for k, (dy, dx) in enumerate(TAPS):
        s = dy * W + dx
        rolled = xf if s == 0 else pltpu.roll(xf, (-s) % P, axis=1)   # rolled[r,p] = xf[r, p+s]
        acc = acc + dwcoef_ref[k] * rolled                   # mask already folded into coef
    h = _gelu(acc)                                           # one erf on the whole (R,P) slab

    b1c = b1_ref[...]                                        # (MED, 1)
    b2c = b2_ref[...]                                        # (C, 1)
    gc = gamma_ref[...]                                      # (C, 1)
    bc = beta_ref[...]                                       # (C, 1)

    ln_parts = []
    for n in range(N):
        # ---- pwconv1 (Linear C -> MED): outer-product FMAs at (MED, P) width ----
        acc1 = b1c
        for c in range(C):
            row = n * C + c
            acc1 = acc1 + w1_ref[c] * h[row:row + 1, :]      # (MED,1)*(1,P) -> (MED,P)
        y1 = _gelu(acc1)                                     # one erf per image slab

        # ---- pwconv2 (Linear MED -> C): outer-product FMAs at (C, P) width ----
        acc2 = b2c
        for m in range(MED):
            acc2 = acc2 + w2_ref[m] * y1[m:m + 1, :]         # (C,1)*(1,P) -> (C,P)

        # ---- LayerNorm over the channel rows of this image (sublane mean/var) ----
        mu = jnp.mean(acc2, axis=0, keepdims=True)           # (1, P)
        d = acc2 - mu
        var = jnp.mean(d * d, axis=0, keepdims=True)
        ln_parts.append(d * lax.rsqrt(var + EPS) * gc + bc)  # (C, P)

    # ---- residual at full width + single unmasked full-block store ----
    o_ref[...] = jnp.concatenate(ln_parts, axis=0) + xf


@jax.jit
def bottleneck_forward(x_nchw, params):
    """x_nchw: (N, C, H, W) float32 -> (N, C, H, W) float32."""
    xf = x_nchw.reshape(N * C, H * W)            # free reshape (no transpose, no pad)

    # --- tiny parameter pre-expansions (all < 100 KiB total) ---
    dww_rows = jnp.tile(params["dww"], (1, N))                 # (9, R): row r -> channel r % C
    dwcoef = dww_rows[:, :, None] * TAP_MASK[:, None, :]       # (9, R, P): weight * boundary mask
    dwb_col = jnp.tile(params["dwb"], N)[:, None]              # (R, 1)
    w1c = params["w1"][:, :, None]                             # (C, MED, 1)
    b1c = params["b1"][:, None]                                # (MED, 1)
    w2c = params["w2"][:, :, None]                             # (MED, C, 1)
    b2c = params["b2"][:, None]                                # (C, 1)
    gc = params["gamma"][:, None]                              # (C, 1)
    bc = params["beta"][:, None]                               # (C, 1)

    vmem = pl.BlockSpec(memory_space=pltpu.MemorySpace.VMEM)

    of = pl.pallas_call(
        bottleneck_kernel,
        out_shape=jax.ShapeDtypeStruct((R, P), jnp.float32),
        in_specs=[vmem] * 9,
        out_specs=vmem,
        # No grid: single step (grid-step overhead > compute at this size).
        # v7x-only option: grid=(N,) with dimension_semantics=("parallel",).
    )(xf, dwcoef, dwb_col, w1c, b1c, w2c, b2c, gc, bc)

    return of.reshape(N, C, H, W)


# ---------------------------------------------------------------------------
# pure-JAX reference (for correctness check)
# ---------------------------------------------------------------------------
def bottleneck_reference(x_nchw, params):
    dw = params["dww"].reshape(3, 3, C).transpose(2, 0, 1)[:, None, :, :]   # (C,1,3,3) OIHW
    y = lax.conv_general_dilated(
        x_nchw, dw, window_strides=(1, 1), padding="SAME",
        feature_group_count=C,
        dimension_numbers=("NCHW", "OIHW", "NCHW"),
    ) + params["dwb"].reshape(1, C, 1, 1)
    y = jnp.transpose(y, (0, 2, 3, 1))
    y = _gelu(y)
    y = y @ params["w1"] + params["b1"]
    y = _gelu(y)
    y = y @ params["w2"] + params["b2"]
    mu = y.mean(-1, keepdims=True)
    var = ((y - mu) ** 2).mean(-1, keepdims=True)
    y = (y - mu) / jnp.sqrt(var + EPS) * params["gamma"] + params["beta"]
    y = jnp.transpose(y, (0, 3, 1, 2))
    return y + x_nchw


# ---------------------------------------------------------------------------
# deterministic parameter init
# ---------------------------------------------------------------------------
def init_params(key):
    ks = jax.random.split(key, 8)
    return {
        "dww": 0.2 * jax.random.normal(ks[0], (9, C), jnp.float32),     # dwconv taps, k=(dy+1)*3+(dx+1)
        "dwb": 0.1 * jax.random.normal(ks[1], (C,), jnp.float32),
        "w1": 0.2 * jax.random.normal(ks[2], (C, MED), jnp.float32),    # pwconv1 (Linear in->med)
        "b1": 0.1 * jax.random.normal(ks[3], (MED,), jnp.float32),
        "w2": 0.2 * jax.random.normal(ks[4], (MED, C), jnp.float32),    # pwconv2 (Linear med->out)
        "b2": 0.1 * jax.random.normal(ks[5], (C,), jnp.float32),
        "gamma": 1.0 + 0.1 * jax.random.normal(ks[6], (C,), jnp.float32),
        "beta": 0.1 * jax.random.normal(ks[7], (C,), jnp.float32),
    }


if __name__ == "__main__":
    key = jax.random.PRNGKey(0)
    k_x, k_p = jax.random.split(key)
    x = jax.random.normal(k_x, (N, C, H, W), jnp.float32)
    params = init_params(k_p)

    out = jax.block_until_ready(bottleneck_forward(x, params))
    ref = jax.block_until_ready(bottleneck_reference(x, params))
    np.testing.assert_allclose(np.asarray(out), np.asarray(ref), rtol=1e-4, atol=1e-4)

    print("KERNEL_OK")
</pallas_src>

<mosaic_0001>
module attributes {stable_mosaic.version = 11 : i64} {
  func.func @bottleneck_kernel(%arg0: memref<8x256xf32, #tpu.memory_space<vmem>>, %arg1: memref<9x8x256xf32, #tpu.memory_space<vmem>>, %arg2: memref<8x1xf32, #tpu.memory_space<vmem>>, %arg3: memref<4x8x1xf32, #tpu.memory_space<vmem>>, %arg4: memref<8x1xf32, #tpu.memory_space<vmem>>, %arg5: memref<8x4x1xf32, #tpu.memory_space<vmem>>, %arg6: memref<4x1xf32, #tpu.memory_space<vmem>>, %arg7: memref<4x1xf32, #tpu.memory_space<vmem>>, %arg8: memref<4x1xf32, #tpu.memory_space<vmem>>, %arg9: memref<8x256xf32, #tpu.memory_space<vmem>>) attributes {dimension_semantics = [], scalar_prefetch = 0 : i64, scratch_operands = 0 : i64, tpu.core_type = #tpu.core_type<tc>} {
    %c0 = arith.constant 0 : index
    %c0_0 = arith.constant 0 : index
    %0 = vector.load %arg0[%c0, %c0_0] : memref<8x256xf32, #tpu.memory_space<vmem>>, vector<8x256xf32>
    %c0_1 = arith.constant 0 : index
    %c0_2 = arith.constant 0 : index
    %1 = vector.load %arg2[%c0_1, %c0_2] : memref<8x1xf32, #tpu.memory_space<vmem>>, vector<8x1xf32>
    %c17_i32 = arith.constant 17 : i32
    %2 = tpu.dynamic_rotate %0 by %c17_i32 dim 1 : vector<8x256xf32>, i32 -> vector<8x256xf32>
    %c0_3 = arith.constant 0 : index
    %c0_4 = arith.constant 0 : index
    %c0_5 = arith.constant 0 : index
    %3 = vector.load %arg1[%c0_3, %c0_4, %c0_5] : memref<9x8x256xf32, #tpu.memory_space<vmem>>, vector<1x8x256xf32>
    %4 = vector.shape_cast %3 : vector<1x8x256xf32> to vector<8x256xf32>
    %5 = arith.mulf %4, %2 : vector<8x256xf32>
    %6 = vector.broadcast %1 : vector<8x1xf32> to vector<8x256xf32>
    %7 = arith.addf %6, %5 : vector<8x256xf32>
    %c16_i32 = arith.constant 16 : i32
    %8 = tpu.dynamic_rotate %0 by %c16_i32 dim 1 : vector<8x256xf32>, i32 -> vector<8x256xf32>
    %c1 = arith.constant 1 : index
    %c0_6 = arith.constant 0 : index
    %c0_7 = arith.constant 0 : index
    %9 = vector.load %arg1[%c1, %c0_6, %c0_7] : memref<9x8x256xf32, #tpu.memory_space<vmem>>, vector<1x8x256xf32>
    %10 = vector.shape_cast %9 : vector<1x8x256xf32> to vector<8x256xf32>
    %11 = arith.mulf %10, %8 : vector<8x256xf32>
    %12 = arith.addf %7, %11 : vector<8x256xf32>
    %c15_i32 = arith.constant 15 : i32
    %13 = tpu.dynamic_rotate %0 by %c15_i32 dim 1 : vector<8x256xf32>, i32 -> vector<8x256xf32>
    %c2 = arith.constant 2 : index
    %c0_8 = arith.constant 0 : index
    %c0_9 = arith.constant 0 : index
    %14 = vector.load %arg1[%c2, %c0_8, %c0_9] : memref<9x8x256xf32, #tpu.memory_space<vmem>>, vector<1x8x256xf32>
    %15 = vector.shape_cast %14 : vector<1x8x256xf32> to vector<8x256xf32>
    %16 = arith.mulf %15, %13 : vector<8x256xf32>
    %17 = arith.addf %12, %16 : vector<8x256xf32>
    %c1_i32 = arith.constant 1 : i32
    %18 = tpu.dynamic_rotate %0 by %c1_i32 dim 1 : vector<8x256xf32>, i32 -> vector<8x256xf32>
    %c3 = arith.constant 3 : index
    %c0_10 = arith.constant 0 : index
    %c0_11 = arith.constant 0 : index
    %19 = vector.load %arg1[%c3, %c0_10, %c0_11] : memref<9x8x256xf32, #tpu.memory_space<vmem>>, vector<1x8x256xf32>
    %20 = vector.shape_cast %19 : vector<1x8x256xf32> to vector<8x256xf32>
    %21 = arith.mulf %20, %18 : vector<8x256xf32>
    %22 = arith.addf %17, %21 : vector<8x256xf32>
    %c4 = arith.constant 4 : index
    %c0_12 = arith.constant 0 : index
    %c0_13 = arith.constant 0 : index
    %23 = vector.load %arg1[%c4, %c0_12, %c0_13] : memref<9x8x256xf32, #tpu.memory_space<vmem>>, vector<1x8x256xf32>
    %24 = vector.shape_cast %23 : vector<1x8x256xf32> to vector<8x256xf32>
    %25 = arith.mulf %24, %0 : vector<8x256xf32>
    %26 = arith.addf %22, %25 : vector<8x256xf32>
    %c255_i32 = arith.constant 255 : i32
    %27 = tpu.dynamic_rotate %0 by %c255_i32 dim 1 : vector<8x256xf32>, i32 -> vector<8x256xf32>
    %c5 = arith.constant 5 : index
    %c0_14 = arith.constant 0 : index
    %c0_15 = arith.constant 0 : index
    %28 = vector.load %arg1[%c5, %c0_14, %c0_15] : memref<9x8x256xf32, #tpu.memory_space<vmem>>, vector<1x8x256xf32>
    %29 = vector.shape_cast %28 : vector<1x8x256xf32> to vector<8x256xf32>
    %30 = arith.mulf %29, %27 : vector<8x256xf32>
    %31 = arith.addf %26, %30 : vector<8x256xf32>
    %c241_i32 = arith.constant 241 : i32
    %32 = tpu.dynamic_rotate %0 by %c241_i32 dim 1 : vector<8x256xf32>, i32 -> vector<8x256xf32>
    %c6 = arith.constant 6 : index
    %c0_16 = arith.constant 0 : index
    %c0_17 = arith.constant 0 : index
    %33 = vector.load %arg1[%c6, %c0_16, %c0_17] : memref<9x8x256xf32, #tpu.memory_space<vmem>>, vector<1x8x256xf32>
    %34 = vector.shape_cast %33 : vector<1x8x256xf32> to vector<8x256xf32>
    %35 = arith.mulf %34, %32 : vector<8x256xf32>
    %36 = arith.addf %31, %35 : vector<8x256xf32>
    %c240_i32 = arith.constant 240 : i32
    %37 = tpu.dynamic_rotate %0 by %c240_i32 dim 1 : vector<8x256xf32>, i32 -> vector<8x256xf32>
    %c7 = arith.constant 7 : index
    %c0_18 = arith.constant 0 : index
    %c0_19 = arith.constant 0 : index
    %38 = vector.load %arg1[%c7, %c0_18, %c0_19] : memref<9x8x256xf32, #tpu.memory_space<vmem>>, vector<1x8x256xf32>
    %39 = vector.shape_cast %38 : vector<1x8x256xf32> to vector<8x256xf32>
    %40 = arith.mulf %39, %37 : vector<8x256xf32>
    %41 = arith.addf %36, %40 : vector<8x256xf32>
    %c239_i32 = arith.constant 239 : i32
    %42 = tpu.dynamic_rotate %0 by %c239_i32 dim 1 : vector<8x256xf32>, i32 -> vector<8x256xf32>
    %c8 = arith.constant 8 : index
    %c0_20 = arith.constant 0 : index
    %c0_21 = arith.constant 0 : index
    %43 = vector.load %arg1[%c8, %c0_20, %c0_21] : memref<9x8x256xf32, #tpu.memory_space<vmem>>, vector<1x8x256xf32>
    %44 = vector.shape_cast %43 : vector<1x8x256xf32> to vector<8x256xf32>
    %45 = arith.mulf %44, %42 : vector<8x256xf32>
    %46 = arith.addf %41, %45 : vector<8x256xf32>
    %cst = arith.constant 5.000000e-01 : f32
    %47 = vector.broadcast %cst : f32 to vector<8x256xf32>
    %48 = arith.mulf %47, %46 : vector<8x256xf32>
    %cst_22 = arith.constant 0.707106769 : f32
    %49 = vector.broadcast %cst_22 : f32 to vector<8x256xf32>
    %50 = arith.mulf %46, %49 : vector<8x256xf32>
    %51 = math.erf %50 : vector<8x256xf32>
    %cst_23 = arith.constant 1.000000e+00 : f32
    %52 = vector.broadcast %cst_23 : f32 to vector<8x256xf32>
    %53 = arith.addf %52, %51 : vector<8x256xf32>
    %54 = arith.mulf %48, %53 : vector<8x256xf32>
    %c0_24 = arith.constant 0 : index
    %c0_25 = arith.constant 0 : index
    %55 = vector.load %arg4[%c0_24, %c0_25] : memref<8x1xf32, #tpu.memory_space<vmem>>, vector<8x1xf32>
    %c0_26 = arith.constant 0 : index
    %c0_27 = arith.constant 0 : index
    %56 = vector.load %arg6[%c0_26, %c0_27] : memref<4x1xf32, #tpu.memory_space<vmem>>, vector<4x1xf32>
    %c0_28 = arith.constant 0 : index
    %c0_29 = arith.constant 0 : index
    %57 = vector.load %arg7[%c0_28, %c0_29] : memref<4x1xf32, #tpu.memory_space<vmem>>, vector<4x1xf32>
    %c0_30 = arith.constant 0 : index
    %c0_31 = arith.constant 0 : index
    %58 = vector.load %arg8[%c0_30, %c0_31] : memref<4x1xf32, #tpu.memory_space<vmem>>, vector<4x1xf32>
    %c0_32 = arith.constant 0 : index
    %c0_33 = arith.constant 0 : index
    %c0_34 = arith.constant 0 : index
    %59 = vector.load %arg3[%c0_32, %c0_33, %c0_34] : memref<4x8x1xf32, #tpu.memory_space<vmem>>, vector<1x8x1xf32>
    %60 = vector.shape_cast %59 : vector<1x8x1xf32> to vector<8x1xf32>
    %61 = vector.extract_strided_slice %54 {offsets = [0, 0], sizes = [1, 256], strides = [1, 1]} : vector<8x256xf32> to vector<1x256xf32>
    %62 = vector.broadcast %60 : vector<8x1xf32> to vector<8x256xf32>
    %63 = vector.broadcast %61 : vector<1x256xf32> to vector<8x256xf32>
    %64 = arith.mulf %62, %63 : vector<8x256xf32>
    %65 = vector.broadcast %55 : vector<8x1xf32> to vector<8x256xf32>
    %66 = arith.addf %65, %64 : vector<8x256xf32>
    %c1_35 = arith.constant 1 : index
    %c0_36 = arith.constant 0 : index
    %c0_37 = arith.constant 0 : index
    %67 = vector.load %arg3[%c1_35, %c0_36, %c0_37] : memref<4x8x1xf32, #tpu.memory_space<vmem>>, vector<1x8x1xf32>
    %68 = vector.shape_cast %67 : vector<1x8x1xf32> to vector<8x1xf32>
    %69 = vector.extract_strided_slice %54 {offsets = [1, 0], sizes = [1, 256], strides = [1, 1]} : vector<8x256xf32> to vector<1x256xf32>
    %70 = vector.broadcast %68 : vector<8x1xf32> to vector<8x256xf32>
    %71 = vector.broadcast %69 : vector<1x256xf32> to vector<8x256xf32>
    %72 = arith.mulf %70, %71 : vector<8x256xf32>
    %73 = arith.addf %66, %72 : vector<8x256xf32>
    %c2_38 = arith.constant 2 : index
    %c0_39 = arith.constant 0 : index
    %c0_40 = arith.constant 0 : index
    %74 = vector.load %arg3[%c2_38, %c0_39, %c0_40] : memref<4x8x1xf32, #tpu.memory_space<vmem>>, vector<1x8x1xf32>
    %75 = vector.shape_cast %74 : vector<1x8x1xf32> to vector<8x1xf32>
    %76 = vector.extract_strided_slice %54 {offsets = [2, 0], sizes = [1, 256], strides = [1, 1]} : vector<8x256xf32> to vector<1x256xf32>
    %77 = vector.broadcast %75 : vector<8x1xf32> to vector<8x256xf32>
    %78 = vector.broadcast %76 : vector<1x256xf32> to vector<8x256xf32>
    %79 = arith.mulf %77, %78 : vector<8x256xf32>
    %80 = arith.addf %73, %79 : vector<8x256xf32>
    %c3_41 = arith.constant 3 : index
    %c0_42 = arith.constant 0 : index
    %c0_43 = arith.constant 0 : index
    %81 = vector.load %arg3[%c3_41, %c0_42, %c0_43] : memref<4x8x1xf32, #tpu.memory_space<vmem>>, vector<1x8x1xf32>
    %82 = vector.shape_cast %81 : vector<1x8x1xf32> to vector<8x1xf32>
    %83 = vector.extract_strided_slice %54 {offsets = [3, 0], sizes = [1, 256], strides = [1, 1]} : vector<8x256xf32> to vector<1x256xf32>
    %84 = vector.broadcast %82 : vector<8x1xf32> to vector<8x256xf32>
    %85 = vector.broadcast %83 : vector<1x256xf32> to vector<8x256xf32>
    %86 = arith.mulf %84, %85 : vector<8x256xf32>
    %87 = arith.addf %80, %86 : vector<8x256xf32>
    %cst_44 = arith.constant 5.000000e-01 : f32
    %88 = vector.broadcast %cst_44 : f32 to vector<8x256xf32>
    %89 = arith.mulf %88, %87 : vector<8x256xf32>
    %cst_45 = arith.constant 0.707106769 : f32
    %90 = vector.broadcast %cst_45 : f32 to vector<8x256xf32>
    %91 = arith.mulf %87, %90 : vector<8x256xf32>
    %92 = math.erf %91 : vector<8x256xf32>
    %cst_46 = arith.constant 1.000000e+00 : f32
    %93 = vector.broadcast %cst_46 : f32 to vector<8x256xf32>
    %94 = arith.addf %93, %92 : vector<8x256xf32>
    %95 = arith.mulf %89, %94 : vector<8x256xf32>
    %c0_47 = arith.constant 0 : index
    %c0_48 = arith.constant 0 : index
    %c0_49 = arith.constant 0 : index
    %96 = vector.load %arg5[%c0_47, %c0_48, %c0_49] : memref<8x4x1xf32, #tpu.memory_space<vmem>>, vector<1x4x1xf32>
    %97 = vector.shape_cast %96 : vector<1x4x1xf32> to vector<4x1xf32>
    %98 = vector.extract_strided_slice %95 {offsets = [0, 0], sizes = [1, 256], strides = [1, 1]} : vector<8x256xf32> to vector<1x256xf32>
    %99 = vector.broadcast %97 : vector<4x1xf32> to vector<4x256xf32>
    %100 = vector.broadcast %98 : vector<1x256xf32> to vector<4x256xf32>
    %101 = arith.mulf %99, %100 : vector<4x256xf32>
    %102 = vector.broadcast %56 : vector<4x1xf32> to vector<4x256xf32>
    %103 = arith.addf %102, %101 : vector<4x256xf32>
    %c1_50 = arith.constant 1 : index
    %c0_51 = arith.constant 0 : index
    %c0_52 = arith.constant 0 : index
    %104 = vector.load %arg5[%c1_50, %c0_51, %c0_52] : memref<8x4x1xf32, #tpu.memory_space<vmem>>, vector<1x4x1xf32>
    %105 = vector.shape_cast %104 : vector<1x4x1xf32> to vector<4x1xf32>
    %106 = vector.extract_strided_slice %95 {offsets = [1, 0], sizes = [1, 256], strides = [1, 1]} : vector<8x256xf32> to vector<1x256xf32>
    %107 = vector.broadcast %105 : vector<4x1xf32> to vector<4x256xf32>
    %108 = vector.broadcast %106 : vector<1x256xf32> to vector<4x256xf32>
    %109 = arith.mulf %107, %108 : vector<4x256xf32>
    %110 = arith.addf %103, %109 : vector<4x256xf32>
    %c2_53 = arith.constant 2 : index
    %c0_54 = arith.constant 0 : index
    %c0_55 = arith.constant 0 : index
    %111 = vector.load %arg5[%c2_53, %c0_54, %c0_55] : memref<8x4x1xf32, #tpu.memory_space<vmem>>, vector<1x4x1xf32>
    %112 = vector.shape_cast %111 : vector<1x4x1xf32> to vector<4x1xf32>
    %113 = vector.extract_strided_slice %95 {offsets = [2, 0], sizes = [1, 256], strides = [1, 1]} : vector<8x256xf32> to vector<1x256xf32>
    %114 = vector.broadcast %112 : vector<4x1xf32> to vector<4x256xf32>
    %115 = vector.broadcast %113 : vector<1x256xf32> to vector<4x256xf32>
    %116 = arith.mulf %114, %115 : vector<4x256xf32>
    %117 = arith.addf %110, %116 : vector<4x256xf32>
    %c3_56 = arith.constant 3 : index
    %c0_57 = arith.constant 0 : index
    %c0_58 = arith.constant 0 : index
    %118 = vector.load %arg5[%c3_56, %c0_57, %c0_58] : memref<8x4x1xf32, #tpu.memory_space<vmem>>, vector<1x4x1xf32>
    %119 = vector.shape_cast %118 : vector<1x4x1xf32> to vector<4x1xf32>
    %120 = vector.extract_strided_slice %95 {offsets = [3, 0], sizes = [1, 256], strides = [1, 1]} : vector<8x256xf32> to vector<1x256xf32>
    %121 = vector.broadcast %119 : vector<4x1xf32> to vector<4x256xf32>
    %122 = vector.broadcast %120 : vector<1x256xf32> to vector<4x256xf32>
    %123 = arith.mulf %121, %122 : vector<4x256xf32>
    %124 = arith.addf %117, %123 : vector<4x256xf32>
    %c4_59 = arith.constant 4 : index
    %c0_60 = arith.constant 0 : index
    %c0_61 = arith.constant 0 : index
    %125 = vector.load %arg5[%c4_59, %c0_60, %c0_61] : memref<8x4x1xf32, #tpu.memory_space<vmem>>, vector<1x4x1xf32>
    %126 = vector.shape_cast %125 : vector<1x4x1xf32> to vector<4x1xf32>
    %127 = vector.extract_strided_slice %95 {offsets = [4, 0], sizes = [1, 256], strides = [1, 1]} : vector<8x256xf32> to vector<1x256xf32>
    %128 = vector.broadcast %126 : vector<4x1xf32> to vector<4x256xf32>
    %129 = vector.broadcast %127 : vector<1x256xf32> to vector<4x256xf32>
    %130 = arith.mulf %128, %129 : vector<4x256xf32>
    %131 = arith.addf %124, %130 : vector<4x256xf32>
    %c5_62 = arith.constant 5 : index
    %c0_63 = arith.constant 0 : index
    %c0_64 = arith.constant 0 : index
    %132 = vector.load %arg5[%c5_62, %c0_63, %c0_64] : memref<8x4x1xf32, #tpu.memory_space<vmem>>, vector<1x4x1xf32>
    %133 = vector.shape_cast %132 : vector<1x4x1xf32> to vector<4x1xf32>
    %134 = vector.extract_strided_slice %95 {offsets = [5, 0], sizes = [1, 256], strides = [1, 1]} : vector<8x256xf32> to vector<1x256xf32>
    %135 = vector.broadcast %133 : vector<4x1xf32> to vector<4x256xf32>
    %136 = vector.broadcast %134 : vector<1x256xf32> to vector<4x256xf32>
    %137 = arith.mulf %135, %136 : vector<4x256xf32>
    %138 = arith.addf %131, %137 : vector<4x256xf32>
    %c6_65 = arith.constant 6 : index
    %c0_66 = arith.constant 0 : index
    %c0_67 = arith.constant 0 : index
    %139 = vector.load %arg5[%c6_65, %c0_66, %c0_67] : memref<8x4x1xf32, #tpu.memory_space<vmem>>, vector<1x4x1xf32>
    %140 = vector.shape_cast %139 : vector<1x4x1xf32> to vector<4x1xf32>
    %141 = vector.extract_strided_slice %95 {offsets = [6, 0], sizes = [1, 256], strides = [1, 1]} : vector<8x256xf32> to vector<1x256xf32>
    %142 = vector.broadcast %140 : vector<4x1xf32> to vector<4x256xf32>
    %143 = vector.broadcast %141 : vector<1x256xf32> to vector<4x256xf32>
    %144 = arith.mulf %142, %143 : vector<4x256xf32>
    %145 = arith.addf %138, %144 : vector<4x256xf32>
    %c7_68 = arith.constant 7 : index
    %c0_69 = arith.constant 0 : index
    %c0_70 = arith.constant 0 : index
    %146 = vector.load %arg5[%c7_68, %c0_69, %c0_70] : memref<8x4x1xf32, #tpu.memory_space<vmem>>, vector<1x4x1xf32>
    %147 = vector.shape_cast %146 : vector<1x4x1xf32> to vector<4x1xf32>
    %148 = vector.extract_strided_slice %95 {offsets = [7, 0], sizes = [1, 256], strides = [1, 1]} : vector<8x256xf32> to vector<1x256xf32>
    %149 = vector.broadcast %147 : vector<4x1xf32> to vector<4x256xf32>
    %150 = vector.broadcast %148 : vector<1x256xf32> to vector<4x256xf32>
    %151 = arith.mulf %149, %150 : vector<4x256xf32>
    %152 = arith.addf %145, %151 : vector<4x256xf32>
    %cst_71 = arith.constant dense<0.000000e+00> : vector<256xf32>
    %153 = vector.multi_reduction <add>, %152, %cst_71 [0] : vector<4x256xf32> to vector<256xf32>
    %154 = vector.shape_cast %153 : vector<256xf32> to vector<1x256xf32>
    %cst_72 = arith.constant 4.000000e+00 : f32
    %155 = vector.broadcast %cst_72 : f32 to vector<1x256xf32>
    %156 = arith.divf %154, %155 : vector<1x256xf32>
    %157 = vector.broadcast %156 : vector<1x256xf32> to vector<4x256xf32>
    %158 = arith.subf %152, %157 : vector<4x256xf32>
    %159 = arith.mulf %158, %158 : vector<4x256xf32>
    %cst_73 = arith.constant dense<0.000000e+00> : vector<256xf32>
    %160 = vector.multi_reduction <add>, %159, %cst_73 [0] : vector<4x256xf32> to vector<256xf32>
    %161 = vector.shape_cast %160 : vector<256xf32> to vector<1x256xf32>
    %cst_74 = arith.constant 4.000000e+00 : f32
    %162 = vector.broadcast %cst_74 : f32 to vector<1x256xf32>
    %163 = arith.divf %161, %162 : vector<1x256xf32>
    %cst_75 = arith.constant 9.99999974E-6 : f32
    %164 = vector.broadcast %cst_75 : f32 to vector<1x256xf32>
    %165 = arith.addf %163, %164 : vector<1x256xf32>
    %166 = math.rsqrt %165 : vector<1x256xf32>
    %167 = vector.broadcast %166 : vector<1x256xf32> to vector<4x256xf32>
    %168 = arith.mulf %158, %167 : vector<4x256xf32>
    %169 = vector.broadcast %57 : vector<4x1xf32> to vector<4x256xf32>
    %170 = arith.mulf %168, %169 : vector<4x256xf32>
    %171 = vector.broadcast %58 : vector<4x1xf32> to vector<4x256xf32>
    %172 = arith.addf %170, %171 : vector<4x256xf32>
    %c0_76 = arith.constant 0 : index
    %c0_77 = arith.constant 0 : index
    %c0_78 = arith.constant 0 : index
    %173 = vector.load %arg3[%c0_76, %c0_77, %c0_78] : memref<4x8x1xf32, #tpu.memory_space<vmem>>, vector<1x8x1xf32>
    %174 = vector.shape_cast %173 : vector<1x8x1xf32> to vector<8x1xf32>
    %175 = vector.extract_strided_slice %54 {offsets = [4, 0], sizes = [1, 256], strides = [1, 1]} : vector<8x256xf32> to vector<1x256xf32>
    %176 = vector.broadcast %174 : vector<8x1xf32> to vector<8x256xf32>
    %177 = vector.broadcast %175 : vector<1x256xf32> to vector<8x256xf32>
    %178 = arith.mulf %176, %177 : vector<8x256xf32>
    %179 = vector.broadcast %55 : vector<8x1xf32> to vector<8x256xf32>
    %180 = arith.addf %179, %178 : vector<8x256xf32>
    %c1_79 = arith.constant 1 : index
    %c0_80 = arith.constant 0 : index
    %c0_81 = arith.constant 0 : index
    %181 = vector.load %arg3[%c1_79, %c0_80, %c0_81] : memref<4x8x1xf32, #tpu.memory_space<vmem>>, vector<1x8x1xf32>
    %182 = vector.shape_cast %181 : vector<1x8x1xf32> to vector<8x1xf32>
    %183 = vector.extract_strided_slice %54 {offsets = [5, 0], sizes = [1, 256], strides = [1, 1]} : vector<8x256xf32> to vector<1x256xf32>
    %184 = vector.broadcast %182 : vector<8x1xf32> to vector<8x256xf32>
    %185 = vector.broadcast %183 : vector<1x256xf32> to vector<8x256xf32>
    %186 = arith.mulf %184, %185 : vector<8x256xf32>
    %187 = arith.addf %180, %186 : vector<8x256xf32>
    %c2_82 = arith.constant 2 : index
    %c0_83 = arith.constant 0 : index
    %c0_84 = arith.constant 0 : index
    %188 = vector.load %arg3[%c2_82, %c0_83, %c0_84] : memref<4x8x1xf32, #tpu.memory_space<vmem>>, vector<1x8x1xf32>
    %189 = vector.shape_cast %188 : vector<1x8x1xf32> to vector<8x1xf32>
    %190 = vector.extract_strided_slice %54 {offsets = [6, 0], sizes = [1, 256], strides = [1, 1]} : vector<8x256xf32> to vector<1x256xf32>
    %191 = vector.broadcast %189 : vector<8x1xf32> to vector<8x256xf32>
    %192 = vector.broadcast %190 : vector<1x256xf32> to vector<8x256xf32>
    %193 = arith.mulf %191, %192 : vector<8x256xf32>
    %194 = arith.addf %187, %193 : vector<8x256xf32>
    %c3_85 = arith.constant 3 : index
    %c0_86 = arith.constant 0 : index
    %c0_87 = arith.constant 0 : index
    %195 = vector.load %arg3[%c3_85, %c0_86, %c0_87] : memref<4x8x1xf32, #tpu.memory_space<vmem>>, vector<1x8x1xf32>
    %196 = vector.shape_cast %195 : vector<1x8x1xf32> to vector<8x1xf32>
    %197 = vector.extract_strided_slice %54 {offsets = [7, 0], sizes = [1, 256], strides = [1, 1]} : vector<8x256xf32> to vector<1x256xf32>
    %198 = vector.broadcast %196 : vector<8x1xf32> to vector<8x256xf32>
    %199 = vector.broadcast %197 : vector<1x256xf32> to vector<8x256xf32>
    %200 = arith.mulf %198, %199 : vector<8x256xf32>
    %201 = arith.addf %194, %200 : vector<8x256xf32>
    %cst_88 = arith.constant 5.000000e-01 : f32
    %202 = vector.broadcast %cst_88 : f32 to vector<8x256xf32>
    %203 = arith.mulf %202, %201 : vector<8x256xf32>
    %cst_89 = arith.constant 0.707106769 : f32
    %204 = vector.broadcast %cst_89 : f32 to vector<8x256xf32>
    %205 = arith.mulf %201, %204 : vector<8x256xf32>
    %206 = math.erf %205 : vector<8x256xf32>
    %cst_90 = arith.constant 1.000000e+00 : f32
    %207 = vector.broadcast %cst_90 : f32 to vector<8x256xf32>
    %208 = arith.addf %207, %206 : vector<8x256xf32>
    %209 = arith.mulf %203, %208 : vector<8x256xf32>
    %c0_91 = arith.constant 0 : index
    %c0_92 = arith.constant 0 : index
    %c0_93 = arith.constant 0 : index
    %210 = vector.load %arg5[%c0_91, %c0_92, %c0_93] : memref<8x4x1xf32, #tpu.memory_space<vmem>>, vector<1x4x1xf32>
    %211 = vector.shape_cast %210 : vector<1x4x1xf32> to vector<4x1xf32>
    %212 = vector.extract_strided_slice %209 {offsets = [0, 0], sizes = [1, 256], strides = [1, 1]} : vector<8x256xf32> to vector<1x256xf32>
    %213 = vector.broadcast %211 : vector<4x1xf32> to vector<4x256xf32>
    %214 = vector.broadcast %212 : vector<1x256xf32> to vector<4x256xf32>
    %215 = arith.mulf %213, %214 : vector<4x256xf32>
    %216 = vector.broadcast %56 : vector<4x1xf32> to vector<4x256xf32>
    %217 = arith.addf %216, %215 : vector<4x256xf32>
    %c1_94 = arith.constant 1 : index
    %c0_95 = arith.constant 0 : index
    %c0_96 = arith.constant 0 : index
    %218 = vector.load %arg5[%c1_94, %c0_95, %c0_96] : memref<8x4x1xf32, #tpu.memory_space<vmem>>, vector<1x4x1xf32>
    %219 = vector.shape_cast %218 : vector<1x4x1xf32> to vector<4x1xf32>
    %220 = vector.extract_strided_slice %209 {offsets = [1, 0], sizes = [1, 256], strides = [1, 1]} : vector<8x256xf32> to vector<1x256xf32>
    %221 = vector.broadcast %219 : vector<4x1xf32> to vector<4x256xf32>
    %222 = vector.broadcast %220 : vector<1x256xf32> to vector<4x256xf32>
    %223 = arith.mulf %221, %222 : vector<4x256xf32>
    %224 = arith.addf %217, %223 : vector<4x256xf32>
    %c2_97 = arith.constant 2 : index
    %c0_98 = arith.constant 0 : index
    %c0_99 = arith.constant 0 : index
    %225 = vector.load %arg5[%c2_97, %c0_98, %c0_99] : memref<8x4x1xf32, #tpu.memory_space<vmem>>, vector<1x4x1xf32>
    %226 = vector.shape_cast %225 : vector<1x4x1xf32> to vector<4x1xf32>
    %227 = vector.extract_strided_slice %209 {offsets = [2, 0], sizes = [1, 256], strides = [1, 1]} : vector<8x256xf32> to vector<1x256xf32>
    %228 = vector.broadcast %226 : vector<4x1xf32> to vector<4x256xf32>
    %229 = vector.broadcast %227 : vector<1x256xf32> to vector<4x256xf32>
    %230 = arith.mulf %228, %229 : vector<4x256xf32>
    %231 = arith.addf %224, %230 : vector<4x256xf32>
    %c3_100 = arith.constant 3 : index
    %c0_101 = arith.constant 0 : index
    %c0_102 = arith.constant 0 : index
    %232 = vector.load %arg5[%c3_100, %c0_101, %c0_102] : memref<8x4x1xf32, #tpu.memory_space<vmem>>, vector<1x4x1xf32>
    %233 = vector.shape_cast %232 : vector<1x4x1xf32> to vector<4x1xf32>
    %234 = vector.extract_strided_slice %209 {offsets = [3, 0], sizes = [1, 256], strides = [1, 1]} : vector<8x256xf32> to vector<1x256xf32>
    %235 = vector.broadcast %233 : vector<4x1xf32> to vector<4x256xf32>
    %236 = vector.broadcast %234 : vector<1x256xf32> to vector<4x256xf32>
    %237 = arith.mulf %235, %236 : vector<4x256xf32>
    %238 = arith.addf %231, %237 : vector<4x256xf32>
    %c4_103 = arith.constant 4 : index
    %c0_104 = arith.constant 0 : index
    %c0_105 = arith.constant 0 : index
    %239 = vector.load %arg5[%c4_103, %c0_104, %c0_105] : memref<8x4x1xf32, #tpu.memory_space<vmem>>, vector<1x4x1xf32>
    %240 = vector.shape_cast %239 : vector<1x4x1xf32> to vector<4x1xf32>
    %241 = vector.extract_strided_slice %209 {offsets = [4, 0], sizes = [1, 256], strides = [1, 1]} : vector<8x256xf32> to vector<1x256xf32>
    %242 = vector.broadcast %240 : vector<4x1xf32> to vector<4x256xf32>
    %243 = vector.broadcast %241 : vector<1x256xf32> to vector<4x256xf32>
    %244 = arith.mulf %242, %243 : vector<4x256xf32>
    %245 = arith.addf %238, %244 : vector<4x256xf32>
    %c5_106 = arith.constant 5 : index
    %c0_107 = arith.constant 0 : index
    %c0_108 = arith.constant 0 : index
    %246 = vector.load %arg5[%c5_106, %c0_107, %c0_108] : memref<8x4x1xf32, #tpu.memory_space<vmem>>, vector<1x4x1xf32>
    %247 = vector.shape_cast %246 : vector<1x4x1xf32> to vector<4x1xf32>
    %248 = vector.extract_strided_slice %209 {offsets = [5, 0], sizes = [1, 256], strides = [1, 1]} : vector<8x256xf32> to vector<1x256xf32>
    %249 = vector.broadcast %247 : vector<4x1xf32> to vector<4x256xf32>
    %250 = vector.broadcast %248 : vector<1x256xf32> to vector<4x256xf32>
    %251 = arith.mulf %249, %250 : vector<4x256xf32>
    %252 = arith.addf %245, %251 : vector<4x256xf32>
    %c6_109 = arith.constant 6 : index
    %c0_110 = arith.constant 0 : index
    %c0_111 = arith.constant 0 : index
    %253 = vector.load %arg5[%c6_109, %c0_110, %c0_111] : memref<8x4x1xf32, #tpu.memory_space<vmem>>, vector<1x4x1xf32>
    %254 = vector.shape_cast %253 : vector<1x4x1xf32> to vector<4x1xf32>
    %255 = vector.extract_strided_slice %209 {offsets = [6, 0], sizes = [1, 256], strides = [1, 1]} : vector<8x256xf32> to vector<1x256xf32>
    %256 = vector.broadcast %254 : vector<4x1xf32> to vector<4x256xf32>
    %257 = vector.broadcast %255 : vector<1x256xf32> to vector<4x256xf32>
    %258 = arith.mulf %256, %257 : vector<4x256xf32>
    %259 = arith.addf %252, %258 : vector<4x256xf32>
    %c7_112 = arith.constant 7 : index
    %c0_113 = arith.constant 0 : index
    %c0_114 = arith.constant 0 : index
    %260 = vector.load %arg5[%c7_112, %c0_113, %c0_114] : memref<8x4x1xf32, #tpu.memory_space<vmem>>, vector<1x4x1xf32>
    %261 = vector.shape_cast %260 : vector<1x4x1xf32> to vector<4x1xf32>
    %262 = vector.extract_strided_slice %209 {offsets = [7, 0], sizes = [1, 256], strides = [1, 1]} : vector<8x256xf32> to vector<1x256xf32>
    %263 = vector.broadcast %261 : vector<4x1xf32> to vector<4x256xf32>
    %264 = vector.broadcast %262 : vector<1x256xf32> to vector<4x256xf32>
    %265 = arith.mulf %263, %264 : vector<4x256xf32>
    %266 = arith.addf %259, %265 : vector<4x256xf32>
    %cst_115 = arith.constant dense<0.000000e+00> : vector<256xf32>
    %267 = vector.multi_reduction <add>, %266, %cst_115 [0] : vector<4x256xf32> to vector<256xf32>
    %268 = vector.shape_cast %267 : vector<256xf32> to vector<1x256xf32>
    %cst_116 = arith.constant 4.000000e+00 : f32
    %269 = vector.broadcast %cst_116 : f32 to vector<1x256xf32>
    %270 = arith.divf %268, %269 : vector<1x256xf32>
    %271 = vector.broadcast %270 : vector<1x256xf32> to vector<4x256xf32>
    %272 = arith.subf %266, %271 : vector<4x256xf32>
    %273 = arith.mulf %272, %272 : vector<4x256xf32>
    %cst_117 = arith.constant dense<0.000000e+00> : vector<256xf32>
    %274 = vector.multi_reduction <add>, %273, %cst_117 [0] : vector<4x256xf32> to vector<256xf32>
    %275 = vector.shape_cast %274 : vector<256xf32> to vector<1x256xf32>
    %cst_118 = arith.constant 4.000000e+00 : f32
    %276 = vector.broadcast %cst_118 : f32 to vector<1x256xf32>
    %277 = arith.divf %275, %276 : vector<1x256xf32>
    %cst_119 = arith.constant 9.99999974E-6 : f32
    %278 = vector.broadcast %cst_119 : f32 to vector<1x256xf32>
    %279 = arith.addf %277, %278 : vector<1x256xf32>
    %280 = math.rsqrt %279 : vector<1x256xf32>
    %281 = vector.broadcast %280 : vector<1x256xf32> to vector<4x256xf32>
    %282 = arith.mulf %272, %281 : vector<4x256xf32>
    %283 = vector.broadcast %57 : vector<4x1xf32> to vector<4x256xf32>
    %284 = arith.mulf %282, %283 : vector<4x256xf32>
    %285 = vector.broadcast %58 : vector<4x1xf32> to vector<4x256xf32>
    %286 = arith.addf %284, %285 : vector<4x256xf32>
    %287 = tpu.concatenate %172, %286 in 0 : vector<4x256xf32>, vector<4x256xf32> -> vector<8x256xf32>
    %288 = arith.addf %287, %0 : vector<8x256xf32>
    %c0_120 = arith.constant 0 : index
    %c0_121 = arith.constant 0 : index
    %289 = vector.load %arg9[%c0_120, %c0_121] : memref<8x256xf32, #tpu.memory_space<vmem>>, vector<8x256xf32>
    tpu.vector_store %arg9[%c0_120, %c0_121], %288 {strides = array<i32>} : memref<8x256xf32, #tpu.memory_space<vmem>>, vector<8x256xf32>,
    return
  }
}

</mosaic_0001>

<llo_original>
// kernel: tile.0
$region0: #{tile.0}
  %s0 = inlined_call_operand.vmem [shape: f32[2,4], index: 0, kind: input, shape index: {}]
  %s1 = inlined_call_operand.vmem [shape: f32[8,1], index: 1, kind: output, shape index: {}]
  $region1: #{tile.0} parent=0
    #allocation0 [shape = 'u8[4096]{0}', space=vmem, size = 0x1000, scoped, tag = 'scoped mem for input reshape']
    %s3 = sshllo.u32 0, 2
    %v4 = vld [vmem:[%s0] sm:%s3]
    %5 = vst [vmem:[#allocation0] sm:%s3] %v4
    %v6 = vld [vmem:[#allocation0] sm:$0x3]
    %vm7 = vcmask 7168
    %8 = vst.msk [vmem:[%s1] ss:$4 sm:$0x3] %vm7, %v6
    %v9 = vld [vmem:[#allocation0] sm:$0x3]
    %10 = vrot.lane.b32.xlu0 %v9, 127
    %v11 = vpop.permute.xlu0 %10
    %vm12 = vcmask 7168
    %s13 = scalar_lea.vmem %s1, 1
    %14 = vst.msk [vmem:[%s13] ss:$4 sm:$0x3] %vm12, %v11
    %v15 = vld [vmem:[#allocation0] sm:$0x3]
    %16 = vrot.lane.b32.xlu0 %v15, 126
    %v17 = vpop.permute.xlu0 %16
    %vm18 = vcmask 7168
    %s19 = scalar_lea.vmem %s1, 2
    %20 = vst.msk [vmem:[%s19] ss:$4 sm:$0x3] %vm18, %v17
    %v21 = vld [vmem:[#allocation0] sm:$0x3]
    %22 = vrot.lane.b32.xlu0 %v21, 125
    %v23 = vpop.permute.xlu0 %22
    %vm24 = vcmask 7168
    %s25 = scalar_lea.vmem %s1, 3
    %26 = vst.msk [vmem:[%s25] ss:$4 sm:$0x3] %vm24, %v23

// kernel: tile.18
$region0: #{tile.18}
  #allocation0 [shape = 's32[1]{0}', space=sflag, size = 0x4, scoped, tag = 'scoped memory for tile.18']
  %s0 = inlined_call_operand.vmem [shape: f32[4], index: 0, kind: input, shape index: {}]
  %s1 = inlined_call_operand.vmem [shape: f32[2,4], index: 1, kind: output, shape index: {}]
  // Predicated region
  $region2: #{tile.18} parent=0 // pred_check
    _
  $region3: #{tile.18} parent=0 // pred_check_branch
    %3 = sbr.rel (0) target = $region5
  $region4: #{tile.18} parent=0 // pred_region
    _
  $region5: #{tile.18} parent=0 // pred_fallthru
    _
  %v4 = vld [vmem:[%s0] ss:$0 sm:$0xff]
  %5 = vst [vmem:[%s1] sm:$0x3] %v4

// kernel: bottleneck_forward.1
$region0: #{bottleneck_forward.1}
  #allocation0 [shape = 'u32[]', space=smem, size = 0x4, offset = 0x4, fixed_abs, tag = 'smem constant byte address 0x4 - core index']
  #allocation1 [shape = 'u32[144,128]{1,0:T(1,128)}', space=vmem, size = 0x12000, scoped, tag = 'internal scratch']
  %s0 = inlined_call_operand.vmem [shape: f32[8,256], index: 0, kind: input, shape index: {}]
  %s1 = inlined_call_operand.vmem [shape: f32[9,8,256], index: 1, kind: input, shape index: {}]
  %s2 = inlined_call_operand.vmem [shape: f32[8,1], index: 2, kind: input, shape index: {}]
  %s3 = inlined_call_operand.vmem [shape: f32[4,8,1], index: 3, kind: input, shape index: {}]
  %s4 = inlined_call_operand.vmem [shape: f32[8,1], index: 4, kind: input, shape index: {}]
  %s5 = inlined_call_operand.vmem [shape: f32[8,4,1], index: 5, kind: input, shape index: {}]
  %s6 = inlined_call_operand.vmem [shape: f32[4,1], index: 6, kind: input, shape index: {}]
  %s7 = inlined_call_operand.vmem [shape: f32[4,1], index: 7, kind: input, shape index: {}]
  %s8 = inlined_call_operand.vmem [shape: f32[4,1], index: 8, kind: input, shape index: {}]
  %s9 = inlined_call_operand.vmem [shape: f32[8,256], index: 9, kind: output, shape index: {}]
  %s10 = sld [smem:[#allocation0]]
  $region46: #{bottleneck_forward.1} parent=0
    _
  %s12 = ssub.s32 1, %s10
  %s13 = scalar_select 0, %s12, %s10
  // Predicated region
  $region2: #{bottleneck_forward.1} parent=0 // pred_check
    _
  $region3: #{bottleneck_forward.1} parent=0 // pred_check_branch
    %15 = sbr.rel (0) target = $region5
  $region4: #{bottleneck_forward.1} parent=0 // pred_region
    _
  $region5: #{bottleneck_forward.1} parent=0 // pred_fallthru
    _
  // Predicated region
  $region6: #{bottleneck_forward.1} parent=0 // pred_check
    _
  $region7: #{bottleneck_forward.1} parent=0 // pred_check_branch
    %17 = sbr.rel (0) target = $region9
  $region8: #{bottleneck_forward.1} parent=0 // pred_region
    _
  $region9: #{bottleneck_forward.1} parent=0 // pred_fallthru
    _
  // Predicated region
  $region10: #{bottleneck_forward.1} parent=0 // pred_check
    _
  $region11: #{bottleneck_forward.1} parent=0 // pred_check_branch
    %19 = sbr.rel (0) target = $region13
  $region12: #{bottleneck_forward.1} parent=0 // pred_region
    _
  $region13: #{bottleneck_forward.1} parent=0 // pred_fallthru
    _
  // Predicated region
  $region14: #{bottleneck_forward.1} parent=0 // pred_check
    _
  $region15: #{bottleneck_forward.1} parent=0 // pred_check_branch
    %21 = sbr.rel (0) target = $region17
  $region16: #{bottleneck_forward.1} parent=0 // pred_region
    _
  $region17: #{bottleneck_forward.1} parent=0 // pred_fallthru
    _
  // Predicated region
  $region18: #{bottleneck_forward.1} parent=0 // pred_check
    _
  $region19: #{bottleneck_forward.1} parent=0 // pred_check_branch
    %23 = sbr.rel (0) target = $region21
  $region20: #{bottleneck_forward.1} parent=0 // pred_region
    _
  $region21: #{bottleneck_forward.1} parent=0 // pred_fallthru
    _
  // Predicated region
  $region22: #{bottleneck_forward.1} parent=0 // pred_check
    _
  $region23: #{bottleneck_forward.1} parent=0 // pred_check_branch
    %25 = sbr.rel (0) target = $region25
  $region24: #{bottleneck_forward.1} parent=0 // pred_region
    _
  $region25: #{bottleneck_forward.1} parent=0 // pred_fallthru
    _
  // Predicated region
  $region26: #{bottleneck_forward.1} parent=0 // pred_check
    _
  $region27: #{bottleneck_forward.1} parent=0 // pred_check_branch
    %27 = sbr.rel (0) target = $region29
  $region28: #{bottleneck_forward.1} parent=0 // pred_region
    _
  $region29: #{bottleneck_forward.1} parent=0 // pred_fallthru
    _
  // Predicated region
  $region30: #{bottleneck_forward.1} parent=0 // pred_check
    _
  $region31: #{bottleneck_forward.1} parent=0 // pred_check_branch
    %29 = sbr.rel (0) target = $region33
  $region32: #{bottleneck_forward.1} parent=0 // pred_region
    _
  $region33: #{bottleneck_forward.1} parent=0 // pred_fallthru
    _
  // Predicated region
  $region34: #{bottleneck_forward.1} parent=0 // pred_check
    _
  $region35: #{bottleneck_forward.1} parent=0 // pred_check_branch
    %31 = sbr.rel (0) target = $region37
  $region36: #{bottleneck_forward.1} parent=0 // pred_region
    _
  $region37: #{bottleneck_forward.1} parent=0 // pred_fallthru
    _
  %v32 = vld [vmem:[%s0] sm:$0xff]
  %v33 = vld [vmem:[%s0 + $0x8] sm:$0xff]
  %v34 = vld [vmem:[%s2] sm:$0xff]
  %35 = vrot.lane.b32.xlu0 %v32, 17
  %v36 = vpop.permute.xlu0 %35
  %37 = vrot.lane.b32.xlu0 %v33, 17
  %v38 = vpop.permute.xlu0 %37
  %v39 = vlaneseq
  %v40 = vand.u32 %v39, 127
  %vm41 = vcmp.lt.s32.totalorder %v40, 17
  %v42 = vsel %vm41, %v36, %v38
  %v43 = vsel %vm41, %v38, %v36
  %v44 = vld [vmem:[%s1] sm:$0xff]
  %v45 = vld [vmem:[%s1 + $0x8] sm:$0xff]
  %v46 = vmul.f32 %v44, %v43
  %v47 = vmul.f32 %v45, %v42
  %49 = vset.pattern.permute.xlu0 0
  %50 = vperm.xlu0 %49, %v34
  %v51 = vpop.permute.xlu0 %50
  %v53 = vadd.f32 %v51, %v46
  %v54 = vadd.f32 %v51, %v47
  %55 = vrot.lane.b32.xlu0 %v32, 16
  %v56 = vpop.permute.xlu0 %55
  %57 = vrot.lane.b32.xlu0 %v33, 16
  %v58 = vpop.permute.xlu0 %57
  %vm59 = vcmp.lt.s32.totalorder %v40, 16
  %v60 = vsel %vm59, %v56, %v58
  %v61 = vsel %vm59, %v58, %v56
  %s62 = scalar_lea.vmem %s1, 16
  %v63 = vld [vmem:[%s62] sm:$0xff]
  %v64 = vld [vmem:[%s62 + $0x8] sm:$0xff]
  %v65 = vmul.f32 %v63, %v61
  %v66 = vmul.f32 %v64, %v60
  %v67 = vadd.f32 %v53, %v65
  %v68 = vadd.f32 %v54, %v66
  %69 = vrot.lane.b32.xlu0 %v32, 15
  %v70 = vpop.permute.xlu0 %69
  %71 = vrot.lane.b32.xlu0 %v33, 15
  %v72 = vpop.permute.xlu0 %71
  %vm73 = vcmp.lt.s32.totalorder %v40, 15
  %v74 = vsel %vm73, %v70, %v72
  %v75 = vsel %vm73, %v72, %v70
  %s76 = scalar_lea.vmem %s1, 32
  %v77 = vld [vmem:[%s76] sm:$0xff]
  %v78 = vld [vmem:[%s76 + $0x8] sm:$0xff]
  %v79 = vmul.f32 %v77, %v75
  %v80 = vmul.f32 %v78, %v74
  %v81 = vadd.f32 %v67, %v79
  %v82 = vadd.f32 %v68, %v80
  %83 = vrot.lane.b32.xlu0 %v32, 1
  %v84 = vpop.permute.xlu0 %83
  %85 = vrot.lane.b32.xlu0 %v33, 1
  %v86 = vpop.permute.xlu0 %85
  %vm87 = vcmp.lt.s32.totalorder %v40, 1
  %v88 = vsel %vm87, %v84, %v86
  %v89 = vsel %vm87, %v86, %v84
  %s90 = scalar_lea.vmem %s1, 48
  %v91 = vld [vmem:[%s90] sm:$0xff]
  %v92 = vld [vmem:[%s90 + $0x8] sm:$0xff]
  %v93 = vmul.f32 %v91, %v89
  %v94 = vmul.f32 %v92, %v88
  %v95 = vadd.f32 %v81, %v93
  %v96 = vadd.f32 %v82, %v94
  %s97 = scalar_lea.vmem %s1, 64
  %v98 = vld [vmem:[%s97] sm:$0xff]
  %v99 = vld [vmem:[%s97 + $0x8] sm:$0xff]
  %v100 = vmul.f32 %v98, %v32
  %v101 = vmul.f32 %v99, %v33
  %v102 = vadd.f32 %v95, %v100
  %v103 = vadd.f32 %v96, %v101
  %104 = vrot.lane.b32.xlu0 %v32, 127
  %v105 = vpop.permute.xlu0 %104
  %106 = vrot.lane.b32.xlu0 %v33, 127
  %v107 = vpop.permute.xlu0 %106
  %vm108 = vcmp.lt.s32.totalorder %v40, 127
  %v109 = vsel %vm108, %v105, %v107
  %v110 = vsel %vm108, %v107, %v105
  %s111 = scalar_lea.vmem %s1, 80
  %v112 = vld [vmem:[%s111] sm:$0xff]
  %v113 = vld [vmem:[%s111 + $0x8] sm:$0xff]
  %v114 = vmul.f32 %v112, %v109
  %v115 = vmul.f32 %v113, %v110
  %v116 = vadd.f32 %v102, %v114
  %v117 = vadd.f32 %v103, %v115
  %118 = vrot.lane.b32.xlu0 %v32, 113
  %v119 = vpop.permute.xlu0 %118
  %120 = vrot.lane.b32.xlu0 %v33, 113
  %v121 = vpop.permute.xlu0 %120
  %vm122 = vcmp.lt.s32.totalorder %v40, 113
  %v123 = vsel %vm122, %v119, %v121
  %v124 = vsel %vm122, %v121, %v119
  %s125 = scalar_lea.vmem %s1, 96
  %v126 = vld [vmem:[%s125] sm:$0xff]
  %v127 = vld [vmem:[%s125 + $0x8] sm:$0xff]
  %v128 = vmul.f32 %v126, %v123
  %v129 = vmul.f32 %v127, %v124
  %v130 = vadd.f32 %v116, %v128
  %v131 = vadd.f32 %v117, %v129
  %132 = vrot.lane.b32.xlu0 %v32, 112
  %v133 = vpop.permute.xlu0 %132
  %134 = vrot.lane.b32.xlu0 %v33, 112
  %v135 = vpop.permute.xlu0 %134
  %vm136 = vcmp.lt.s32.totalorder %v40, 112
  %v137 = vsel %vm136, %v133, %v135
  %v138 = vsel %vm136, %v135, %v133
  %s139 = scalar_lea.vmem %s1, 112
  %v140 = vld [vmem:[%s139] sm:$0xff]
  %v141 = vld [vmem:[%s139 + $0x8] sm:$0xff]
  %v142 = vmul.f32 %v140, %v137
  %v143 = vmul.f32 %v141, %v138
  %v144 = vadd.f32 %v130, %v142
  %v145 = vadd.f32 %v131, %v143
  %146 = vrot.lane.b32.xlu0 %v32, 111
  %v147 = vpop.permute.xlu0 %146
  %148 = vrot.lane.b32.xlu0 %v33, 111
  %v149 = vpop.permute.xlu0 %148
  %vm150 = vcmp.lt.s32.totalorder %v40, 111
  %v151 = vsel %vm150, %v147, %v149
  %v152 = vsel %vm150, %v149, %v147
  %s153 = scalar_lea.vmem %s1, 128
  %v154 = vld [vmem:[%s153] sm:$0xff]
  %v155 = vld [vmem:[%s153 + $0x8] sm:$0xff]
  %v156 = vmul.f32 %v154, %v151
  %v157 = vmul.f32 %v155, %v152
  %v158 = vadd.f32 %v144, %v156
  %v159 = vadd.f32 %v145, %v157
  %v160 = vmul.f32 %v158, 0.5
  %v161 = vmul.f32 %v159, 0.5
  %v162 = vmul.f32 %v158, 0.70710677
  %v163 = vmul.f32 %v159, 0.70710677
  %v164 = verf.f32.pop %v162
  %v165 = verf.f32.pop %v163
  %v166 = vadd.f32 %v164, 1.0
  %v167 = vadd.f32 %v165, 1.0
  %v168 = vmul.f32 %v160, %v166
  %v169 = vmul.f32 %v161, %v167
  %v170 = vld [vmem:[%s4] sm:$0xff]
  %v171 = vld [vmem:[%s6] sm:$0xf]
  %v172 = vld [vmem:[%s7] sm:$0xf]
  %v173 = vld [vmem:[%s8] sm:$0xf]
  %v174 = vld [vmem:[%s3] sm:$0xff]
  %176 = vset.pattern.permute.xlu0 0
  %177 = vperm.xlu0 %176, %v174
  %v178 = vpop.permute.xlu0 %177
  %v180 = vlaneseq
  %v181 = vshrl.u32 %v180, 7
  %v182 = vsub.s32 0, %v181
  %v183 = vrot.slane %v168, %v182
  %v184 = vlaneseq
  %v185 = vshrl.u32 %v184, 7
  %v186 = vsub.s32 0, %v185
  %v187 = vrot.slane %v169, %v186
  %v188 = vmul.f32 %v178, %v183
  %v189 = vmul.f32 %v178, %v187
  %191 = vset.pattern.permute.xlu0 0
  %192 = vperm.xlu0 %191, %v170
  %v193 = vpop.permute.xlu0 %192
  %v195 = vadd.f32 %v193, %v188
  %v196 = vadd.f32 %v193, %v189
  %s197 = scalar_lea.vmem %s3, 8
  %v198 = vld [vmem:[%s197] sm:$0xff]
  %200 = vset.pattern.permute.xlu0 0
  %201 = vperm.xlu0 %200, %v198
  %v202 = vpop.permute.xlu0 %201
  %v204 = vlaneseq
  %v205 = vshrl.u32 %v204, 7
  %v206 = vsub.s32 1, %v205
  %v207 = vrot.slane %v168, %v206
  %v208 = vlaneseq
  %v209 = vshrl.u32 %v208, 7
  %v210 = vsub.s32 1, %v209
  %v211 = vrot.slane %v169, %v210
  %v212 = vmul.f32 %v202, %v207
  %v213 = vmul.f32 %v202, %v211
  %v214 = vadd.f32 %v195, %v212
  %v215 = vadd.f32 %v196, %v213
  %s216 = scalar_lea.vmem %s3, 16
  %v217 = vld [vmem:[%s216] sm:$0xff]
  %219 = vset.pattern.permute.xlu0 0
  %220 = vperm.xlu0 %219, %v217
  %v221 = vpop.permute.xlu0 %220
  %v223 = vlaneseq
  %v224 = vshrl.u32 %v223, 7
  %v225 = vsub.s32 2, %v224
  %v226 = vrot.slane %v168, %v225
  %v227 = vlaneseq
  %v228 = vshrl.u32 %v227, 7
  %v229 = vsub.s32 2, %v228
  %v230 = vrot.slane %v169, %v229
  %v231 = vmul.f32 %v221, %v226
  %v232 = vmul.f32 %v221, %v230
  %v233 = vadd.f32 %v214, %v231
  %v234 = vadd.f32 %v215, %v232
  %s235 = scalar_lea.vmem %s3, 24
  %v236 = vld [vmem:[%s235] sm:$0xff]
  %238 = vset.pattern.permute.xlu0 0
  %239 = vperm.xlu0 %238, %v236
  %v240 = vpop.permute.xlu0 %239
  %v242 = vlaneseq
  %v243 = vshrl.u32 %v242, 7
  %v244 = vsub.s32 3, %v243
  %v245 = vrot.slane %v168, %v244
  %v246 = vlaneseq
  %v247 = vshrl.u32 %v246, 7
  %v248 = vsub.s32 3, %v247
  %v249 = vrot.slane %v169, %v248
  %v250 = vmul.f32 %v240, %v245
  %v251 = vmul.f32 %v240, %v249
  %v252 = vadd.f32 %v233, %v250
  %v253 = vadd.f32 %v234, %v251
  %v254 = vmul.f32 %v252, 0.5
  %v255 = vmul.f32 %v253, 0.5
  %v256 = vmul.f32 %v252, 0.70710677
  %v257 = vmul.f32 %v253, 0.70710677
  %v258 = verf.f32.pop %v256
  %v259 = verf.f32.pop %v257
  %v260 = vadd.f32 %v258, 1.0
  %v261 = vadd.f32 %v259, 1.0
  %v262 = vmul.f32 %v254, %v260
  %v263 = vmul.f32 %v255, %v261
  %v264 = vld [vmem:[%s5] sm:$0xf]
  %266 = vset.pattern.permute.xlu0 0
  %267 = vperm.xlu0 %266, %v264
  %v268 = vpop.permute.xlu0 %267
  %v270 = vlaneseq
  %v271 = vshrl.u32 %v270, 7
  %v272 = vsub.s32 0, %v271
  %v273 = vrot.slane %v262, %v272
  %v274 = vlaneseq
  %v275 = vshrl.u32 %v274, 7
  %v276 = vsub.s32 0, %v275
  %v277 = vrot.slane %v263, %v276
  %v278 = vmul.f32 %v268, %v273
  %v279 = vmul.f32 %v268, %v277
  %281 = vset.pattern.permute.xlu0 0
  %282 = vperm.xlu0 %281, %v171
  %v283 = vpop.permute.xlu0 %282
  %v285 = vadd.f32 %v283, %v278
  %v286 = vadd.f32 %v283, %v279
  %s287 = scalar_lea.vmem %s5, 4
  %v288 = vld [vmem:[%s287] sm:$0xf]
  %290 = vset.pattern.permute.xlu0 0
  %291 = vperm.xlu0 %290, %v288
  %v292 = vpop.permute.xlu0 %291
  %v294 = vlaneseq
  %v295 = vshrl.u32 %v294, 7
  %v296 = vsub.s32 1, %v295
  %v297 = vrot.slane %v262, %v296
  %v298 = vlaneseq
  %v299 = vshrl.u32 %v298, 7
  %v300 = vsub.s32 1, %v299
  %v301 = vrot.slane %v263, %v300
  %v302 = vmul.f32 %v292, %v297
  %v303 = vmul.f32 %v292, %v301
  %v304 = vadd.f32 %v285, %v302
  %v305 = vadd.f32 %v286, %v303
  %s306 = scalar_lea.vmem %s5, 8
  %v307 = vld [vmem:[%s306] sm:$0xf]
  %309 = vset.pattern.permute.xlu0 0
  %310 = vperm.xlu0 %309, %v307
  %v311 = vpop.permute.xlu0 %310
  %v313 = vlaneseq
  %v314 = vshrl.u32 %v313, 7
  %v315 = vsub.s32 2, %v314
  %v316 = vrot.slane %v262, %v315
  %v317 = vlaneseq
  %v318 = vshrl.u32 %v317, 7
  %v319 = vsub.s32 2, %v318
  %v320 = vrot.slane %v263, %v319
  %v321 = vmul.f32 %v311, %v316
  %v322 = vmul.f32 %v311, %v320
  %v323 = vadd.f32 %v304, %v321
  %v324 = vadd.f32 %v305, %v322
  %s325 = scalar_lea.vmem %s5, 12
  %v326 = vld [vmem:[%s325] sm:$0xf]
  %328 = vset.pattern.permute.xlu0 0
  %329 = vperm.xlu0 %328, %v326
  %v330 = vpop.permute.xlu0 %329
  %v332 = vlaneseq
  %v333 = vshrl.u32 %v332, 7
  %v334 = vsub.s32 3, %v333
  %v335 = vrot.slane %v262, %v334
  %v336 = vlaneseq
  %v337 = vshrl.u32 %v336, 7
  %v338 = vsub.s32 3, %v337
  %v339 = vrot.slane %v263, %v338
  %v340 = vmul.f32 %v330, %v335
  %v341 = vmul.f32 %v330, %v339
  %v342 = vadd.f32 %v323, %v340
  %v343 = vadd.f32 %v324, %v341
  %s344 = scalar_lea.vmem %s5, 16
  %v345 = vld [vmem:[%s344] sm:$0xf]
  %347 = vset.pattern.permute.xlu0 0
  %348 = vperm.xlu0 %347, %v345
  %v349 = vpop.permute.xlu0 %348
  %v351 = vlaneseq
  %v352 = vshrl.u32 %v351, 7
  %v353 = vsub.s32 4, %v352
  %v354 = vrot.slane %v262, %v353
  %v355 = vlaneseq
  %v356 = vshrl.u32 %v355, 7
  %v357 = vsub.s32 4, %v356
  %v358 = vrot.slane %v263, %v357
  %v359 = vmul.f32 %v349, %v354
  %v360 = vmul.f32 %v349, %v358
  %v361 = vadd.f32 %v342, %v359
  %v362 = vadd.f32 %v343, %v360
  %s363 = scalar_lea.vmem %s5, 20
  %v364 = vld [vmem:[%s363] sm:$0xf]
  %366 = vset.pattern.permute.xlu0 0
  %367 = vperm.xlu0 %366, %v364
  %v368 = vpop.permute.xlu0 %367
  %v370 = vlaneseq
  %v371 = vshrl.u32 %v370, 7
  %v372 = vsub.s32 5, %v371
  %v373 = vrot.slane %v262, %v372
  %v374 = vlaneseq
  %v375 = vshrl.u32 %v374, 7
  %v376 = vsub.s32 5, %v375
  %v377 = vrot.slane %v263, %v376
  %v378 = vmul.f32 %v368, %v373
  %v379 = vmul.f32 %v368, %v377
  %v380 = vadd.f32 %v361, %v378
  %v381 = vadd.f32 %v362, %v379
  %s382 = scalar_lea.vmem %s5, 24
  %v383 = vld [vmem:[%s382] sm:$0xf]
  %385 = vset.pattern.permute.xlu0 0
  %386 = vperm.xlu0 %385, %v383
  %v387 = vpop.permute.xlu0 %386
  %v389 = vlaneseq
  %v390 = vshrl.u32 %v389, 7
  %v391 = vsub.s32 6, %v390
  %v392 = vrot.slane %v262, %v391
  %v393 = vlaneseq
  %v394 = vshrl.u32 %v393, 7
  %v395 = vsub.s32 6, %v394
  %v396 = vrot.slane %v263, %v395
  %v397 = vmul.f32 %v387, %v392
  %v398 = vmul.f32 %v387, %v396
  %v399 = vadd.f32 %v380, %v397
  %v400 = vadd.f32 %v381, %v398
  %s401 = scalar_lea.vmem %s5, 28
  %v402 = vld [vmem:[%s401] sm:$0xf]
  %404 = vset.pattern.permute.xlu0 0
  %405 = vperm.xlu0 %404, %v402
  %v406 = vpop.permute.xlu0 %405
  %v408 = vlaneseq
  %v409 = vshrl.u32 %v408, 7
  %v410 = vsub.s32 7, %v409
  %v411 = vrot.slane %v262, %v410
  %v412 = vlaneseq
  %v413 = vshrl.u32 %v412, 7
  %v414 = vsub.s32 7, %v413
  %v415 = vrot.slane %v263, %v414
  %v416 = vmul.f32 %v406, %v411
  %v417 = vmul.f32 %v406, %v415
  %v418 = vadd.f32 %v399, %v416
  %v419 = vadd.f32 %v400, %v417
  %vm420 = vcmask 1043456
  %v421 = vsel %vm420, %v418, 0.0
  %v422 = vrot.slane %v421, 4
  %v423 = vadd.f32 %v421, %v422
  %v424 = vrot.slane %v423, 2
  %v425 = vadd.f32 %v423, %v424
  %v426 = vrot.slane %v425, 1
  %v427 = vadd.f32 %v425, %v426
  %v428 = vsel %vm420, %v419, 0.0
  %v429 = vrot.slane %v428, 4
  %v430 = vadd.f32 %v428, %v429
  %v431 = vrot.slane %v430, 2
  %v432 = vadd.f32 %v430, %v431
  %v433 = vrot.slane %v432, 1
  %v434 = vadd.f32 %v432, %v433
  %v435 = vrcp.pop 4.0
  %v436 = vmul.f32 %v427, %v435
  %v437 = vmul.f32 %v434, %v435
  %v438 = vsub.f32 %v418, %v436
  %v439 = vsub.f32 %v419, %v437
  %v440 = vmul.f32 %v438, %v438
  %v441 = vmul.f32 %v439, %v439
  %v442 = vsel %vm420, %v440, 0.0
  %v443 = vrot.slane %v442, 4
  %v444 = vadd.f32 %v442, %v443
  %v445 = vrot.slane %v444, 2
  %v446 = vadd.f32 %v444, %v445
  %v447 = vrot.slane %v446, 1
  %v448 = vadd.f32 %v446, %v447
  %v449 = vsel %vm420, %v441, 0.0
  %v450 = vrot.slane %v449, 4
  %v451 = vadd.f32 %v449, %v450
  %v452 = vrot.slane %v451, 2
  %v453 = vadd.f32 %v451, %v452
  %v454 = vrot.slane %v453, 1
  %v455 = vadd.f32 %v453, %v454
  %v456 = vmul.f32 %v448, %v435
  %v457 = vmul.f32 %v455, %v435
  %v458 = vadd.f32 %v456, 1e-05
  %v459 = vadd.f32 %v457, 1e-05
  %v460 = vrsqrt.pop %v458
  %v461 = vrsqrt.pop %v459
  %v462 = vmul.f32 %v438, %v460
  %v463 = vmul.f32 %v439, %v461
  %465 = vset.pattern.permute.xlu0 0
  %466 = vperm.xlu0 %465, %v172
  %v467 = vpop.permute.xlu0 %466
  %v469 = vmul.f32 %v462, %v467
  %v470 = vmul.f32 %v463, %v467
  %472 = vset.pattern.permute.xlu0 0
  %473 = vperm.xlu0 %472, %v173
  %v474 = vpop.permute.xlu0 %473
  %v476 = vadd.f32 %v469, %v474
  %v477 = vadd.f32 %v470, %v474
  %v478 = vlaneseq
  %v479 = vshrl.u32 %v478, 7
  %v480 = vsub.s32 4, %v479
  %v481 = vrot.slane %v168, %v480
  %v482 = vlaneseq
  %v483 = vshrl.u32 %v482, 7
  %v484 = vsub.s32 4, %v483
  %v485 = vrot.slane %v169, %v484
  %v486 = vmul.f32 %v178, %v481
  %v487 = vmul.f32 %v178, %v485
  %v488 = vadd.f32 %v193, %v486
  %v489 = vadd.f32 %v193, %v487
  %v490 = vlaneseq
  %v491 = vshrl.u32 %v490, 7
  %v492 = vsub.s32 5, %v491
  %v493 = vrot.slane %v168, %v492
  %v494 = vlaneseq
  %v495 = vshrl.u32 %v494, 7
  %v496 = vsub.s32 5, %v495
  %v497 = vrot.slane %v169, %v496
  %v498 = vmul.f32 %v202, %v493
  %v499 = vmul.f32 %v202, %v497
  %v500 = vadd.f32 %v488, %v498
  %v501 = vadd.f32 %v489, %v499
  %v502 = vlaneseq
  %v503 = vshrl.u32 %v502, 7
  %v504 = vsub.s32 6, %v503
  %v505 = vrot.slane %v168, %v504
  %v506 = vlaneseq
  %v507 = vshrl.u32 %v506, 7
  %v508 = vsub.s32 6, %v507
  %v509 = vrot.slane %v169, %v508
  %v510 = vmul.f32 %v221, %v505
  %v511 = vmul.f32 %v221, %v509
  %v512 = vadd.f32 %v500, %v510
  %v513 = vadd.f32 %v501, %v511
  %v514 = vlaneseq
  %v515 = vshrl.u32 %v514, 7
  %v516 = vsub.s32 7, %v515
  %v517 = vrot.slane %v168, %v516
  %v518 = vlaneseq
  %v519 = vshrl.u32 %v518, 7
  %v520 = vsub.s32 7, %v519
  %v521 = vrot.slane %v169, %v520
  %v522 = vmul.f32 %v240, %v517
  %v523 = vmul.f32 %v240, %v521
  %v524 = vadd.f32 %v512, %v522
  %v525 = vadd.f32 %v513, %v523
  %v526 = vmul.f32 %v524, 0.5
  %v527 = vmul.f32 %v525, 0.5
  %v528 = vmul.f32 %v524, 0.70710677
  %v529 = vmul.f32 %v525, 0.70710677
  %v530 = verf.f32.pop %v528
  %v531 = verf.f32.pop %v529
  %v532 = vadd.f32 %v530, 1.0
  %v533 = vadd.f32 %v531, 1.0
  %v534 = vmul.f32 %v526, %v532
  %v535 = vmul.f32 %v527, %v533
  %v536 = vlaneseq
  %v537 = vshrl.u32 %v536, 7
  %v538 = vsub.s32 0, %v537
  %v539 = vrot.slane %v534, %v538
  %v540 = vlaneseq
  %v541 = vshrl.u32 %v540, 7
  %v542 = vsub.s32 0, %v541
  %v543 = vrot.slane %v535, %v542
  %v544 = vmul.f32 %v268, %v539
  %v545 = vmul.f32 %v268, %v543
  %v546 = vadd.f32 %v283, %v544
  %v547 = vadd.f32 %v283, %v545
  %v548 = vlaneseq
  %v549 = vshrl.u32 %v548, 7
  %v550 = vsub.s32 1, %v549
  %v551 = vrot.slane %v534, %v550
  %v552 = vlaneseq
  %v553 = vshrl.u32 %v552, 7
  %v554 = vsub.s32 1, %v553
  %v555 = vrot.slane %v535, %v554
  %v556 = vmul.f32 %v292, %v551
  %v557 = vmul.f32 %v292, %v555
  %v558 = vadd.f32 %v546, %v556
  %v559 = vadd.f32 %v547, %v557
  %v560 = vlaneseq
  %v561 = vshrl.u32 %v560, 7
  %v562 = vsub.s32 2, %v561
  %v563 = vrot.slane %v534, %v562
  %v564 = vlaneseq
  %v565 = vshrl.u32 %v564, 7
  %v566 = vsub.s32 2, %v565
  %v567 = vrot.slane %v535, %v566
  %v568 = vmul.f32 %v311, %v563
  %v569 = vmul.f32 %v311, %v567
  %v570 = vadd.f32 %v558, %v568
  %v571 = vadd.f32 %v559, %v569
  %v572 = vlaneseq
  %v573 = vshrl.u32 %v572, 7
  %v574 = vsub.s32 3, %v573
  %v575 = vrot.slane %v534, %v574
  %v576 = vlaneseq
  %v577 = vshrl.u32 %v576, 7
  %v578 = vsub.s32 3, %v577
  %v579 = vrot.slane %v535, %v578
  %v580 = vmul.f32 %v330, %v575
  %v581 = vmul.f32 %v330, %v579
  %v582 = vadd.f32 %v570, %v580
  %v583 = vadd.f32 %v571, %v581
  %v584 = vlaneseq
  %v585 = vshrl.u32 %v584, 7
  %v586 = vsub.s32 4, %v585
  %v587 = vrot.slane %v534, %v586
  %v588 = vlaneseq
  %v589 = vshrl.u32 %v588, 7
  %v590 = vsub.s32 4, %v589
  %v591 = vrot.slane %v535, %v590
  %v592 = vmul.f32 %v349, %v587
  %v593 = vmul.f32 %v349, %v591
  %v594 = vadd.f32 %v582, %v592
  %v595 = vadd.f32 %v583, %v593
  %v596 = vlaneseq
  %v597 = vshrl.u32 %v596, 7
  %v598 = vsub.s32 5, %v597
  %v599 = vrot.slane %v534, %v598
  %v600 = vlaneseq
  %v601 = vshrl.u32 %v600, 7
  %v602 = vsub.s32 5, %v601
  %v603 = vrot.slane %v535, %v602
  %v604 = vmul.f32 %v368, %v599
  %v605 = vmul.f32 %v368, %v603
  %v606 = vadd.f32 %v594, %v604
  %v607 = vadd.f32 %v595, %v605
  %v608 = vlaneseq
  %v609 = vshrl.u32 %v608, 7
  %v610 = vsub.s32 6, %v609
  %v611 = vrot.slane %v534, %v610
  %v612 = vlaneseq
  %v613 = vshrl.u32 %v612, 7
  %v614 = vsub.s32 6, %v613
  %v615 = vrot.slane %v535, %v614
  %v616 = vmul.f32 %v387, %v611
  %v617 = vmul.f32 %v387, %v615
  %v618 = vadd.f32 %v606, %v616
  %v619 = vadd.f32 %v607, %v617
  %v620 = vlaneseq
  %v621 = vshrl.u32 %v620, 7
  %v622 = vsub.s32 7, %v621
  %v623 = vrot.slane %v534, %v622
  %v624 = vlaneseq
  %v625 = vshrl.u32 %v624, 7
  %v626 = vsub.s32 7, %v625
  %v627 = vrot.slane %v535, %v626
  %v628 = vmul.f32 %v406, %v623
  %v629 = vmul.f32 %v406, %v627
  %v630 = vadd.f32 %v618, %v628
  %v631 = vadd.f32 %v619, %v629
  %v632 = vsel %vm420, %v630, 0.0
  %v633 = vrot.slane %v632, 4
  %v634 = vadd.f32 %v632, %v633
  %v635 = vrot.slane %v634, 2
  %v636 = vadd.f32 %v634, %v635
  %v637 = vrot.slane %v636, 1
  %v638 = vadd.f32 %v636, %v637
  %v639 = vsel %vm420, %v631, 0.0
  %v640 = vrot.slane %v639, 4
  %v641 = vadd.f32 %v639, %v640
  %v642 = vrot.slane %v641, 2
  %v643 = vadd.f32 %v641, %v642
  %v644 = vrot.slane %v643, 1
  %v645 = vadd.f32 %v643, %v644
  %v646 = vmul.f32 %v638, %v435
  %v647 = vmul.f32 %v645, %v435
  %v648 = vsub.f32 %v630, %v646
  %v649 = vsub.f32 %v631, %v647
  %v650 = vmul.f32 %v648, %v648
  %v651 = vmul.f32 %v649, %v649
  %v652 = vsel %vm420, %v650, 0.0
  %v653 = vrot.slane %v652, 4
  %v654 = vadd.f32 %v652, %v653
  %v655 = vrot.slane %v654, 2
  %v656 = vadd.f32 %v654, %v655
  %v657 = vrot.slane %v656, 1
  %v658 = vadd.f32 %v656, %v657
  %v659 = vsel %vm420, %v651, 0.0
  %v660 = vrot.slane %v659, 4
  %v661 = vadd.f32 %v659, %v660
  %v662 = vrot.slane %v661, 2
  %v663 = vadd.f32 %v661, %v662
  %v664 = vrot.slane %v663, 1
  %v665 = vadd.f32 %v663, %v664
  %v666 = vmul.f32 %v658, %v435
  %v667 = vmul.f32 %v665, %v435
  %v668 = vadd.f32 %v666, 1e-05
  %v669 = vadd.f32 %v667, 1e-05
  %v670 = vrsqrt.pop %v668
  %v671 = vrsqrt.pop %v669
  %v672 = vmul.f32 %v648, %v670
  %v673 = vmul.f32 %v649, %v671
  %v674 = vmul.f32 %v672, %v467
  %v675 = vmul.f32 %v673, %v467
  %v676 = vadd.f32 %v674, %v474
  %v677 = vadd.f32 %v675, %v474
  %v680 = vrot.slane %v676, 4
  %v681 = vrot.slane %v677, 4
  %v684 = vsel %vm420, %v476, %v680
  %v685 = vsel %vm420, %v477, %v681
  %v686 = vadd.f32 %v684, %v32
  %v687 = vadd.f32 %v685, %v33
  %688 = vst [vmem:[%s9] sm:$0xff] %v686
  %689 = vst [vmem:[%s9 + $0x8] sm:$0xff] %v687
  // Predicated region
  $region38: #{bottleneck_forward.1} parent=0 // pred_check
    _
  $region39: #{bottleneck_forward.1} parent=0 // pred_check_branch
    %691 = sbr.rel (0) target = $region41
  $region40: #{bottleneck_forward.1} parent=0 // pred_region
    _
  $region41: #{bottleneck_forward.1} parent=0 // pred_fallthru
    _
  // Predicated region
  $region42: #{bottleneck_forward.1} parent=0 // pred_check
    _
  $region43: #{bottleneck_forward.1} parent=0 // pred_check_branch
    %693 = sbr.rel (0) target = $region45
  $region44: #{bottleneck_forward.1} parent=0 // pred_region
    _
  $region45: #{bottleneck_forward.1} parent=0 // pred_fallthru
    _

</llo_original>
